<compile_context>
chip_gen: v7x
topology: tpu7x:2x2x1
jax: 0.10.0
libtpu: 0.0.40
codegen_flags: <defaults>
</compile_context>

<pallas_src>
import functools
import math

import jax
import jax.numpy as jnp
import numpy as np
from jax.experimental import pallas as pl
from jax.experimental.pallas import tpu as pltpu

LANE = 128      # section alignment. TODO(synk): pad to 256 in the MXU-bound (wide) regime on v6e/v7x.
SUBLANE = 8


def _round_up(x, m):
    return ((x + m - 1) // m) * m


# ----------------------------- irreps helpers --------------------------------
# An irreps spec is a list of (mul, l, parity) with parity in {+1, -1}.

def irreps_dim(irreps):
    return sum(mul * (2 * l + 1) for mul, l, _ in irreps)


def build_linear_weight(key, irreps_in, irreps_out, dtype=jnp.float32):
    """Dense (dim_in, dim_out) matrix equivalent to e3nn o3.Linear with
    internal weights ~ N(0,1) and 'element' path normalization."""
    dim_in = irreps_dim(irreps_in)
    dim_out = irreps_dim(irreps_out)
    W = np.zeros((dim_in, dim_out), dtype=np.float32)

    out_off = 0
    keys = jax.random.split(key, len(irreps_out) * max(len(irreps_in), 1))
    k_idx = 0
    for mul_out, l_out, p_out in irreps_out:
        ir_dim = 2 * l_out + 1
        fan_in = sum(m for m, l, p in irreps_in if (l, p) == (l_out, p_out))
        in_off = 0
        for mul_in, l_in, p_in in irreps_in:
            blk_in_dim = mul_in * (2 * l_in + 1)
            if (l_in, p_in) == (l_out, p_out):
                w = np.asarray(
                    jax.random.normal(keys[k_idx], (mul_in, mul_out), dtype=jnp.float32)
                )
                k_idx += 1
                w = w / math.sqrt(max(fan_in, 1))
                # kron(w, I_{ir_dim}) maps flattened (mul_in, ir_dim) -> (mul_out, ir_dim)
                W[in_off:in_off + blk_in_dim,
                  out_off:out_off + mul_out * ir_dim] = np.kron(
                      w, np.eye(ir_dim, dtype=np.float32))
            in_off += blk_in_dim
        out_off += mul_out * ir_dim
    return jnp.asarray(W, dtype=dtype)


def build_gate_expansion(irreps_gated, dtype=jnp.float32):
    """0/1 matrix (num_gates, dim_gated): gate g covers the (2l+1) components
    of multiplicity-channel g of the gated irreps (in order)."""
    n_gates = sum(mul for mul, _, _ in irreps_gated)
    dim_gated = irreps_dim(irreps_gated)
    E = np.zeros((n_gates, dim_gated), dtype=np.float32)
    g_idx = 0
    col = 0
    for mul, l, _ in irreps_gated:
        ir_dim = 2 * l + 1
        for _ in range(mul):
            E[g_idx, col:col + ir_dim] = 1.0
            g_idx += 1
            col += ir_dim
    return jnp.asarray(E, dtype=dtype)


# --------------------------- layout preparation -------------------------------

def prepare_gated_linear(W, E, n_scalars, n_gates, *, weight_dtype=jnp.bfloat16):
    """One-time repack of the dense Linear weight / gate-expansion into the
    fused kernel's padded layout.

      mid columns:
        [ scalars | gates | 0 ... sg_pad )  [ 0(n_scalars) | gated | 0 ... out_pad )
          `---- one activated block ----'     `----- output-aligned gated block ---'

    scalars+gates share one lane block (same ReLU*sqrt(2) activation), and the
    gated section is pre-shifted by n_scalars columns so the kernel can emit
    the contiguous e3nn output [scalars | gated] with a single lane-aligned
    select + store.  Weights are stored bf16 (MXU-native on v5e/v6e/v7x);
    accumulation stays f32 in the kernel.
    """
    dim_in, dim_mid = W.shape
    dim_gated = dim_mid - n_scalars - n_gates
    assert E.shape == (n_gates, dim_gated)
    assert n_gates > 0 and dim_gated > 0, "degenerate gate configs not handled"

    sg_pad = _round_up(max(n_scalars + n_gates, 1), LANE)
    out_pad = _round_up(max(n_scalars + dim_gated, 1), LANE)
    dim_mid_pad = sg_pad + out_pad

    W_np = np.zeros((dim_in, dim_mid_pad), np.float32)
    W_np[:, :n_scalars + n_gates] = np.asarray(W[:, :n_scalars + n_gates])
    W_np[:, sg_pad + n_scalars: sg_pad + n_scalars + dim_gated] = \
        np.asarray(W[:, n_scalars + n_gates:])

    E_np = np.zeros((sg_pad, out_pad), np.float32)
    E_np[n_scalars:n_scalars + n_gates,
         n_scalars:n_scalars + dim_gated] = np.asarray(E)

    meta = dict(n_scalars=n_scalars, n_gates=n_gates, dim_gated=dim_gated,
                dim_out=n_scalars + dim_gated,
                sg_pad=sg_pad, out_pad=out_pad, dim_mid_pad=dim_mid_pad)
    return (jnp.asarray(W_np, dtype=weight_dtype),
            jnp.asarray(E_np, dtype=weight_dtype), meta)


# ------------------------------- Pallas kernel --------------------------------

def _gated_linear_kernel(x_ref, w_ref, e_ref, o_ref, *, sg_pad, out_pad, n_scalars):
    # Equivariant linear (MXU, bf16 inputs, f32 accumulation).
    mid = jnp.dot(x_ref[...], w_ref[...], preferred_element_type=jnp.float32)

    sg = mid[:, :sg_pad]        # [scalars | gates | 0-pad]   (128-aligned view)
    g_blk = mid[:, sg_pad:]     # gated, pre-shifted by n_scalars columns

    # e3nn nn.Activation wraps ReLU with normalize2mom; analytic factor sqrt(2).
    # TODO(synk): e3nn estimates this factor by Monte-Carlo (~sqrt(2)); exact value used.
    act_norm = jnp.float32(math.sqrt(2.0))
    sg_act = jnp.maximum(sg, 0.0) * act_norm      # applies to scalars AND gates

    # Broadcast each activated gate over the (2l+1) components of its irrep.
    # E_pad has zero rows at the scalar/pad positions, so the combined block
    # can be fed directly.  Kept as an MXU matmul so mixed-l gated irreps work.
    # TODO(synk): on v5e/v6e (FIFO MXU result path) switch to XLU lane replication.
    gate_rep = jnp.dot(sg_act.astype(e_ref.dtype), e_ref[...],
                       preferred_element_type=jnp.float32)
    gated_out = g_blk * gate_rep                  # zero outside the gated columns

    # Assemble the contiguous [scalars | gated] output with a lane select:
    # column j < n_scalars -> activated scalar, else -> gated value (already at j).
    s_part = sg_act
    if sg_pad > out_pad:
        s_part = s_part[:, :out_pad]              # aligned crop (both 128-multiples)
    elif sg_pad < out_pad:
        s_part = jnp.pad(s_part, ((0, 0), (0, out_pad - sg_pad)))
    lane = jax.lax.broadcasted_iota(jnp.int32, gated_out.shape, 1)
    out = jnp.where(lane < n_scalars, s_part, gated_out)

    o_ref[...] = out.astype(o_ref.dtype)          # single lane-dense, unmasked store


def o3_gated_linear(x, W_pad, E_pad, meta, *, tile_n=512,
                    vmem_budget_bytes=48 * 1024 * 1024, strip_output=True):
    """Fused Gate(Linear(x)).  x: (N, dim_in) float32.

    Returns (N, n_scalars + dim_gated) float32 when strip_output=True;
    otherwise the padded (N, out_pad) kernel layout, which downstream fused
    consumers should prefer (saves the trailing-column slice pass)."""
    N, dim_in = x.shape
    sg_pad, out_pad = meta["sg_pad"], meta["out_pad"]
    dim_mid_pad = sg_pad + out_pad
    dim_out = meta["dim_out"]

    w_bytes = W_pad.dtype.itemsize      # bf16 -> 2
    x_bytes = w_bytes                   # x is cast to the weight dtype below
    o_bytes = x.dtype.itemsize          # f32 output

    # Row tiling: cap the tile so the "parallel" grid axis has >= 2 steps
    # (keeps both v7x TensorCores busy; harmless on single-TC v5e/v6e), then
    # shrink until the per-step VMEM footprint fits the budget (v7x: 64 MiB/TC).
    cap = max(SUBLANE, _round_up(-(-N // 2), SUBLANE))
    tn = max(SUBLANE, min(_round_up(tile_n, SUBLANE), cap))

    def footprint(t):
        return (2 * t * dim_in * x_bytes              # x tile (double-buffered)
                + 2 * t * out_pad * o_bytes           # out tile (double-buffered)
                + 2 * dim_in * dim_mid_pad * w_bytes  # W (TODO(synk): single-buffer)
                + 2 * sg_pad * out_pad * w_bytes      # E
                + 2 * t * dim_mid_pad * 4)            # f32 mid + elementwise temps

    while tn > SUBLANE and footprint(tn) > vmem_budget_bytes:
        tn = max(SUBLANE, _round_up(tn // 2, SUBLANE))

    n_tiles = pl.cdiv(N, tn)
    n_pad = n_tiles * tn

    x_p = x.astype(W_pad.dtype)                       # bf16 halves the x DMA bytes
    if n_pad != N:
        x_p = jnp.pad(x_p, ((0, n_pad - N), (0, 0)))

    flops = 2 * n_pad * dim_in * dim_mid_pad + 2 * n_pad * sg_pad * out_pad
    bytes_accessed = (x_bytes * n_pad * dim_in + w_bytes * dim_in * dim_mid_pad
                      + w_bytes * sg_pad * out_pad + o_bytes * n_pad * out_pad)

    kernel = functools.partial(_gated_linear_kernel, sg_pad=sg_pad,
                               out_pad=out_pad, n_scalars=meta["n_scalars"])
    out_padded = pl.pallas_call(
        kernel,
        out_shape=jax.ShapeDtypeStruct((n_pad, out_pad), x.dtype),
        grid=(n_tiles,),
        in_specs=[
            pl.BlockSpec((tn, dim_in), lambda i: (i, 0)),            # pipelined rows
            pl.BlockSpec((dim_in, dim_mid_pad), lambda i: (0, 0)),   # VMEM-resident
            pl.BlockSpec((sg_pad, out_pad), lambda i: (0, 0)),       # VMEM-resident
        ],
        out_specs=pl.BlockSpec((tn, out_pad), lambda i: (i, 0)),
        compiler_params=pltpu.CompilerParams(
            dimension_semantics=("parallel",),                        # megacore on v7x
            vmem_limit_bytes=int(min(100 * 2**20,
                                     max(32 * 2**20, 2 * footprint(tn)))),
        ),
        cost_estimate=pl.CostEstimate(flops=flops, transcendentals=0,
                                      bytes_accessed=bytes_accessed),
    )(x_p, W_pad, E_pad)

    if not strip_output:
        return out_padded[:N]
    # Single trailing-column slice (gated section was pre-shifted in W/E, so no
    # concatenate pass is needed to recover the contiguous e3nn layout).
    return out_padded[:N, :dim_out]


# ------------------------------ pure-JAX reference ----------------------------

def reference(x, W, E, n_scalars, n_gates):
    mid = x @ W
    s = mid[:, :n_scalars]
    g = mid[:, n_scalars:n_scalars + n_gates]
    gated = mid[:, n_scalars + n_gates:]
    c = math.sqrt(2.0)
    s = jnp.maximum(s, 0.0) * c
    g = jnp.maximum(g, 0.0) * c
    return jnp.concatenate([s, gated * (g @ E)], axis=-1)


# ----------------------------------- main -------------------------------------

if __name__ == "__main__":
    # irreps_input  = "8x0e + 8x1o"   -> dim_in  = 8 + 24 = 32
    # irreps_output = "4x0e + 4x1o"
    #   scalars = 4x0e, gated = 4x1o, gates = 4x0e
    #   gate.irreps_in = 4x0e + 4x0e + 4x1o -> dim_mid = 20
    #   output = 4x0e + 4x1o               -> dim_out = 16
    irreps_input = [(8, 0, +1), (8, 1, -1)]
    irreps_scalars = [(4, 0, +1)]
    irreps_gated = [(4, 1, -1)]
    irreps_gates = [(4, 0, +1)]
    gate_irreps_in = irreps_scalars + irreps_gates + irreps_gated

    n_scalars = irreps_dim(irreps_scalars)          # 4
    n_gates = irreps_dim(irreps_gates)              # 4
    N = 64                                          # nodes / batch

    key = jax.random.PRNGKey(0)
    kx, kw = jax.random.split(key)

    x = jax.random.normal(kx, (N, irreps_dim(irreps_input)), dtype=jnp.float32)
    W = build_linear_weight(kw, irreps_input, gate_irreps_in)   # (32, 20) f32
    E = build_gate_expansion(irreps_gated)                      # (4, 12)  f32

    W_pad, E_pad, meta = prepare_gated_linear(W, E, n_scalars, n_gates)

    # tile_n is capped to ceil(N/2)=32 rows -> a 2-step "parallel" grid
    # (exercises the pipelined path and both TCs on v7x).
    out = o3_gated_linear(x, W_pad, E_pad, meta)
    out = jax.block_until_ready(out)

    ref = reference(x, W, E, n_scalars, n_gates)
    # bf16 weights/activations with f32 accumulation -> relaxed tolerances.
    np.testing.assert_allclose(np.asarray(out), np.asarray(ref),
                               rtol=5e-2, atol=5e-2)
    print("KERNEL_OK")
</pallas_src>

<mosaic_0001>
module attributes {stable_mosaic.version = 11 : i64} {
  func.func @_gated_linear_kernel(%arg0: i32, %arg1: memref<32x32xbf16, #tpu.memory_space<vmem>>, %arg2: memref<32x256xbf16, #tpu.memory_space<vmem>>, %arg3: memref<128x128xbf16, #tpu.memory_space<vmem>>, %arg4: memref<32x128xf32, #tpu.memory_space<vmem>>) attributes {dimension_semantics = [#tpu.dimension_semantics<parallel>], iteration_bounds = array<i64: 2>, scalar_prefetch = 0 : i64, scratch_operands = 0 : i64, tpu.core_type = #tpu.core_type<tc>, window_params = [{transform_indices = @transform_0, window_bounds = array<i64: 32, 32>}, {pipeline_mode = #tpu.pipeline_mode<synchronous>, transform_indices = @transform_1, window_bounds = array<i64: 32, 256>}, {pipeline_mode = #tpu.pipeline_mode<synchronous>, transform_indices = @transform_2, window_bounds = array<i64: 128, 128>}, {transform_indices = @transform_3, window_bounds = array<i64: 32, 128>}]} {
    %c0 = arith.constant 0 : index
    %c0_0 = arith.constant 0 : index
    %0 = vector.load %arg1[%c0, %c0_0] : memref<32x32xbf16, #tpu.memory_space<vmem>>, vector<32x32xbf16>
    %c0_1 = arith.constant 0 : index
    %c0_2 = arith.constant 0 : index
    %1 = vector.load %arg2[%c0_1, %c0_2] : memref<32x256xbf16, #tpu.memory_space<vmem>>, vector<32x256xbf16>
    %cst = arith.constant dense<0.000000e+00> : vector<32x256xf32>
    %2 = tpu.matmul %0, %1, %cst {dimension_numbers = #tpu.dot_dimension_numbers<[1], [0], [0], [1], [0, 0, 1, 1], [], []>} : vector<32x32xbf16>, vector<32x256xbf16>, vector<32x256xf32> -> vector<32x256xf32>
    %3 = vector.extract_strided_slice %2 {offsets = [0, 0], sizes = [32, 128], strides = [1, 1]} : vector<32x256xf32> to vector<32x128xf32>
    %4 = vector.extract_strided_slice %2 {offsets = [0, 128], sizes = [32, 128], strides = [1, 1]} : vector<32x256xf32> to vector<32x128xf32>
    %cst_3 = arith.constant 0.000000e+00 : f32
    %5 = vector.broadcast %cst_3 : f32 to vector<32x128xf32>
    %6 = arith.maximumf %3, %5 : vector<32x128xf32>
    %cst_4 = arith.constant 1.41421354 : f32
    %7 = vector.broadcast %cst_4 : f32 to vector<32x128xf32>
    %8 = arith.mulf %6, %7 : vector<32x128xf32>
    %9 = arith.truncf %8 : vector<32x128xf32> to vector<32x128xbf16>
    %c0_5 = arith.constant 0 : index
    %c0_6 = arith.constant 0 : index
    %10 = vector.load %arg3[%c0_5, %c0_6] : memref<128x128xbf16, #tpu.memory_space<vmem>>, vector<128x128xbf16>
    %cst_7 = arith.constant dense<0.000000e+00> : vector<32x128xf32>
    %11 = tpu.matmul %9, %10, %cst_7 {dimension_numbers = #tpu.dot_dimension_numbers<[1], [0], [0], [1], [0, 0, 1, 1], [], []>} : vector<32x128xbf16>, vector<128x128xbf16>, vector<32x128xf32> -> vector<32x128xf32>
    %12 = arith.mulf %4, %11 : vector<32x128xf32>
    %13 = tpu.iota {dimensions = array<i32: 1>} : vector<32x128xi32>
    %c4_i32 = arith.constant 4 : i32
    %14 = vector.broadcast %c4_i32 : i32 to vector<32x128xi32>
    %15 = arith.cmpi slt, %13, %14 : vector<32x128xi32>
    %16 = arith.select %15, %8, %12 : vector<32x128xi1>, vector<32x128xf32>
    %c0_8 = arith.constant 0 : index
    %c0_9 = arith.constant 0 : index
    %17 = vector.load %arg4[%c0_8, %c0_9] : memref<32x128xf32, #tpu.memory_space<vmem>>, vector<32x128xf32>
    tpu.vector_store %arg4[%c0_8, %c0_9], %16 {strides = array<i32>} : memref<32x128xf32, #tpu.memory_space<vmem>>, vector<32x128xf32>,
    return
  }
  func.func @transform_0(%arg0: i32) -> (i32, i32) {
    %c0_i32 = arith.constant 0 : i32
    %c0_i32_0 = arith.constant 0 : i32
    return %arg0, %c0_i32 : i32, i32
  }
  func.func @transform_1(%arg0: i32) -> (i32, i32) {
    %c0_i32 = arith.constant 0 : i32
    %c0_i32_0 = arith.constant 0 : i32
    %c0_i32_1 = arith.constant 0 : i32
    return %c0_i32, %c0_i32_0 : i32, i32
  }
  func.func @transform_2(%arg0: i32) -> (i32, i32) {
    %c0_i32 = arith.constant 0 : i32
    %c0_i32_0 = arith.constant 0 : i32
    %c0_i32_1 = arith.constant 0 : i32
    return %c0_i32, %c0_i32_0 : i32, i32
  }
  func.func @transform_3(%arg0: i32) -> (i32, i32) {
    %c0_i32 = arith.constant 0 : i32
    %c0_i32_0 = arith.constant 0 : i32
    return %arg0, %c0_i32 : i32, i32
  }
}

</mosaic_0001>

<llo_original>
// kernel: tpu_custom_call.1
$region0: #{tpu_custom_call.1}
  #allocation0 [shape = 'u32[]', space=smem, size = 0x4, offset = 0x4, fixed_abs, tag = 'smem constant byte address 0x4 - core index']
  #allocation1 [shape = 'u32[144,128]{1,0:T(1,128)}', space=vmem, size = 0x12000, scoped, tag = 'internal scratch']
  %s0 = inlined_call_operand.vmem [shape: bf16[64,32], index: 0, kind: input, shape index: {}]
  %s1 = inlined_call_operand.vmem [shape: bf16[32,256], index: 1, kind: input, shape index: {}]
  %s2 = inlined_call_operand.hbm [shape: bf16[128,128], index: 2, kind: input, shape index: {}]
  %s3 = inlined_call_operand.hbm [shape: f32[64,128], index: 3, kind: output, shape index: {}]
  %s4 = sld [smem:[#allocation0]]
  $region49: #{tpu_custom_call.1} parent=0
    _
  %s6 = ssub.s32 1, %s4
  %s7 = scalar_select 0, %s6, %s4
  $region1: #{tpu_custom_call.1} parent=0
    #allocation2 [shape = 'u8[32768]{0}', space=vmem, size = 0x8000, scoped, tag = 'input window, operand 2, single buffered']
    #allocation3 [shape = 's32[2]{0}', space=sflag, size = 0x8, scoped, tag = 'scoped memory for tpu_custom_call.1']
    #allocation4 [shape = 's32[2]{0}', space=sflag, size = 0x8, scoped, tag = 'scoped memory for tpu_custom_call.1']
    #allocation5 [shape = 'u8[32768]{0}', space=vmem, size = 0x8000, scoped, tag = 'output window, operand 0']
    %8 = vsyncpa [#allocation3], 0
    %9 = vsyncpa [#allocation4], 0
    %s10 = scalar_lea.sflag [#allocation4], 1
    %11 = vsyncpa %s10, 0
    loop: start=0, step=1, limit=4
    $region2: #{tpu_custom_call.1} parent=1 // loop_pre_header
      _
    $region3: #{tpu_custom_call.1} parent=1 // loop_header
      %s13 = sphi 0, %s17
      %p14 = scmp.ge.s32.totalorder %s13, 4
      %s23 = sphi 0, %s25
      %s26 = sphi 0, %s23
      %s27 = sphi 0, %s26
      %s43 = sphi 0, %s27
      %s47 = sphi 0, %s47
      %s49 = sphi 0, %s47
      %s50 = sphi 0, %s49
      %s64 = sphi 0, %s50
      %s68 = sphi 0, %s68
      %s70 = sphi 0, %s68
      %s71 = sphi 0, %s70
      %s85 = sphi 0, %s71
      %s91 = sphi 0, %s93
      %s94 = sphi 0, %s91
      %s95 = sphi 0, %s94
      %s111 = sphi 0, %s95
    $region4: #{tpu_custom_call.1} parent=1 // loop_header_branch
      %16 = sbr.rel (%p14) target = $region8
    $region5: #{tpu_custom_call.1} parent=1 // loop_body
      %s18 = ssub.s32 %s13, 1
      %s19 = ssub.s32 %s13, 2
      %s20 = sadd.s32 %s13, 1
      %s21 = ssub.s32 %s13, %s20
      %p22 = scmp.eq.s32.totalorder %s21, 0
      %s24 = sadd.s32 %s23, 1
      %s25 = scalar_select %p22, %s23, %s24
      %p28 = pneg %p22
      %p29 = scmp.eq.s32.totalorder %s13, 1
      %p30 = por %p28, %p29
      %p31 = scmp.ne.s32.totalorder %s23, %s26
      %p32 = scmp.eq.s32.totalorder %s13, 0
      %p33 = por %p31, %p32
      %p34 = scmp.ne.s32.totalorder %s23, %s26
      %p35 = scmp.eq.s32.totalorder %s18, 1
      %p36 = por %p34, %p35
      %p37 = scmp.ne.s32.totalorder %s26, %s27
      %p38 = scmp.eq.s32.totalorder %s18, 0
      %p39 = por %p37, %p38
      %p40 = scmp.ne.s32.totalorder %s26, %s27
      %p41 = scmp.eq.s32.totalorder %s19, 1
      %p42 = por %p40, %p41
      %p44 = scmp.ne.s32.totalorder %s27, %s43
      %p45 = scmp.eq.s32.totalorder %s19, 0
      %p46 = por %p44, %p45
      %s48 = sadd.s32 %s47, 1
      %p51 = scmp.eq.s32.totalorder %s13, 1
      %p52 = scmp.ne.s32.totalorder %s47, %s49
      %p53 = scmp.eq.s32.totalorder %s13, 0
      %p54 = por %p52, %p53
      %p55 = scmp.ne.s32.totalorder %s47, %s49
      %p56 = scmp.eq.s32.totalorder %s18, 1
      %p57 = por %p55, %p56
      %p58 = scmp.ne.s32.totalorder %s49, %s50
      %p59 = scmp.eq.s32.totalorder %s18, 0
      %p60 = por %p58, %p59
      %p61 = scmp.ne.s32.totalorder %s49, %s50
      %p62 = scmp.eq.s32.totalorder %s19, 1
      %p63 = por %p61, %p62
      %p65 = scmp.ne.s32.totalorder %s50, %s64
      %p66 = scmp.eq.s32.totalorder %s19, 0
      %p67 = por %p65, %p66
      %s69 = sadd.s32 %s68, 1
      %p72 = scmp.eq.s32.totalorder %s13, 1
      %p73 = scmp.ne.s32.totalorder %s68, %s70
      %p74 = scmp.eq.s32.totalorder %s13, 0
      %p75 = por %p73, %p74
      %p76 = scmp.ne.s32.totalorder %s68, %s70
      %p77 = scmp.eq.s32.totalorder %s18, 1
      %p78 = por %p76, %p77
      %p79 = scmp.ne.s32.totalorder %s70, %s71
      %p80 = scmp.eq.s32.totalorder %s18, 0
      %p81 = por %p79, %p80
      %p82 = scmp.ne.s32.totalorder %s70, %s71
      %p83 = scmp.eq.s32.totalorder %s19, 1
      %p84 = por %p82, %p83
      %p86 = scmp.ne.s32.totalorder %s71, %s85
      %p87 = scmp.eq.s32.totalorder %s19, 0
      %p88 = por %p86, %p87
      %s89 = ssub.s32 %s13, %s20
      %p90 = scmp.eq.s32.totalorder %s89, 0
      %s92 = sadd.s32 %s91, 1
      %s93 = scalar_select %p90, %s91, %s92
      %p96 = pneg %p90
      %p97 = scmp.eq.s32.totalorder %s13, 1
      %p98 = por %p96, %p97
      %p99 = scmp.ne.s32.totalorder %s91, %s94
      %p100 = scmp.eq.s32.totalorder %s13, 0
      %p101 = por %p99, %p100
      %p102 = scmp.ne.s32.totalorder %s91, %s94
      %p103 = scmp.eq.s32.totalorder %s18, 1
      %p104 = por %p102, %p103
      %p105 = scmp.ne.s32.totalorder %s94, %s95
      %p106 = scmp.eq.s32.totalorder %s18, 0
      %p107 = por %p105, %p106
      %p108 = scmp.ne.s32.totalorder %s94, %s95
      %p109 = scmp.eq.s32.totalorder %s19, 1
      %p110 = por %p108, %p109
      %p112 = scmp.ne.s32.totalorder %s95, %s111
      %p113 = scmp.eq.s32.totalorder %s19, 0
      %p114 = por %p112, %p113
      %p115 = scmp.le.s32.totalorder 1, %s13
      %p116 = scmp.lt.s32.totalorder %s13, 3
      %p117 = pnand %p115, %p116
      %p118 = pneg %p117
      // Predicated region
      $region9: #{tpu_custom_call.1} parent=5 // pred_check
        _
      $region10: #{tpu_custom_call.1} parent=5 // pred_check_branch
        %120 = sbr.rel (%p117) target = $region12
      $region11: #{tpu_custom_call.1} parent=5 // pred_region
        %s121 = ssub.s32 %s13, 1
        // Predicated region
        $region13: #{tpu_custom_call.1} parent=11 // pred_check
          %p122 = pneg %p60
        $region14: #{tpu_custom_call.1} parent=11 // pred_check_branch
          %124 = sbr.rel (%p122) target = $region16
        $region15: #{tpu_custom_call.1} parent=11 // pred_region
          _
        $region16: #{tpu_custom_call.1} parent=11 // pred_fallthru
          _
        // Predicated region
        $region17: #{tpu_custom_call.1} parent=11 // pred_check
          %p125 = pneg %p81
        $region18: #{tpu_custom_call.1} parent=11 // pred_check_branch
          %127 = sbr.rel (%p125) target = $region20
        $region19: #{tpu_custom_call.1} parent=11 // pred_region
          %s129 = ssub.s32 1024, 1024
          %130 = vsyncadd [#allocation3], %s129
          %s131 = sshll.u32 [#allocation2], 4
          %s132 = int_to_ptr.vmem [resolvable:$true] %s131
          %137 = dma.hbm_to_vmem [thread:$0]  %s2, 1024, %s132, [#allocation3], 64, 64, 4
        $region20: #{tpu_custom_call.1} parent=11 // pred_fallthru
          _
      $region12: #{tpu_custom_call.1} parent=5 // pred_fallthru
        _
      %p138 = scmp.lt.s32.totalorder %s13, 2
      // Predicated region
      $region21: #{tpu_custom_call.1} parent=5 // pred_check
        %p139 = pneg %p138
      $region22: #{tpu_custom_call.1} parent=5 // pred_check_branch
        %141 = sbr.rel (%p139) target = $region24
      $region23: #{tpu_custom_call.1} parent=5 // pred_region
        // Predicated region
        $region25: #{tpu_custom_call.1} parent=23 // pred_check
          %p142 = pneg %p33
        $region26: #{tpu_custom_call.1} parent=23 // pred_check_branch
          %144 = sbr.rel (%p142) target = $region28
        $region27: #{tpu_custom_call.1} parent=23 // pred_region
          %s145 = smul.u32 4, %s13
          %p146 = scmp.lt.s32.totalorder %s145, 7
          %s147 = scalar_select %p146, %s145, 7
          %s148 = smul.addr %s147, 4
          %s149 = scalar_lea.vmem %s0, %s148
          %s150 = smul.u32 4, %s13
        $region28: #{tpu_custom_call.1} parent=23 // pred_fallthru
          _
      $region24: #{tpu_custom_call.1} parent=5 // pred_fallthru
        _
      %p151 = scmp.le.s32.totalorder 1, %s13
      %p152 = scmp.lt.s32.totalorder %s13, 3
      %p153 = pnand %p151, %p152
      %p154 = pneg %p153
      // Predicated region
      $region29: #{tpu_custom_call.1} parent=5 // pred_check
        _
      $region30: #{tpu_custom_call.1} parent=5 // pred_check_branch
        %156 = sbr.rel (%p153) target = $region32
      $region31: #{tpu_custom_call.1} parent=5 // pred_region
        %s157 = ssub.s32 %s13, 1
        // Predicated region
        $region33: #{tpu_custom_call.1} parent=31 // pred_check
          %p158 = pneg %p81
        $region34: #{tpu_custom_call.1} parent=31 // pred_check_branch
          %160 = sbr.rel (%p158) target = $region36
        $region35: #{tpu_custom_call.1} parent=31 // pred_region
          %161 = dma.done [#allocation3], 1024
        $region36: #{tpu_custom_call.1} parent=31 // pred_fallthru
          _
        %s162 = smul.u32 4, %s18
        %p163 = scmp.lt.s32.totalorder %s162, 7
        %s164 = scalar_select %p163, %s162, 7
        %s165 = smul.addr %s164, 4
        %s166 = scalar_lea.vmem %s0, %s165
        %p167 = pneg %p39
        %p168 = pneg %p36
        %p169 = pneg %p60
        %p170 = pneg %p57
        %p171 = pneg %p81
        %p172 = pneg %p78
        %p173 = pneg %p107
        %p174 = pneg %p104
        %s175 = sand.u32 %s94, 1
        %s176 = scalar_lea.sflag [#allocation4], %s175
        %s177 = sand.u32 %s94, 1
        %s178 = smul.addr %s177, 32
        %s179 = scalar_lea.vmem [#allocation5], %s178
        %s180 = smul.u32 4, %s18
        %p181 = scmp.lt.s32.totalorder %s180, 7
        %s182 = scalar_select %p181, %s180, 7
        %s183 = smul.addr %s182, 4
        %s184 = scalar_lea.vmem %s0, %s183
        %s185 = smul.u32 4, %s18
        %s186 = smul.u32 4, %s18
        %v188 = vld [vmem:[%s184] sm:$0xf]
        %v189 = vld [vmem:[%s184 + $0x4] sm:$0xf]
        %v190 = vld [vmem:[%s184 + $0x8] sm:$0xf]
        %v191 = vld [vmem:[%s184 + $0xc] sm:$0xf]
        %v192 = vld [vmem:[%s1] sm:$0xff]
        %v193 = vld [vmem:[%s1 + $0x8] sm:$0xff]
        %v194 = vld [vmem:[%s1 + $0x10] sm:$0xff]
        %v195 = vld [vmem:[%s1 + $0x18] sm:$0xff]
        %v200 = vunpack.c.l.b16 %v188
        %v201 = vunpack.c.l.b16 %v189
        %v202 = vunpack.c.l.b16 %v190
        %v203 = vunpack.c.l.b16 %v191
        %v204 = vpack.c.b16 %v201, %v200
        %v205 = vpack.c.b16 %v203, %v202
        %v210 = vunpack.c.l.b16 %v192
        %v211 = vunpack.c.h.b16 %v192
        %v212 = vunpack.c.l.b16 %v193
        %v213 = vunpack.c.h.b16 %v193
        %v214 = vunpack.c.l.b16 %v194
        %v215 = vunpack.c.h.b16 %v194
        %v216 = vunpack.c.l.b16 %v195
        %v217 = vunpack.c.h.b16 %v195
        %v218 = vpack.c.b16 %v212, %v210
        %v219 = vpack.c.b16 %v213, %v211
        %v220 = vpack.c.b16 %v216, %v214
        %v221 = vpack.c.b16 %v217, %v215
        %vm226 = vcmask 261120
        %v228 = vsel %vm226, %v204, 0
        %v231 = vsel %vm226, %v205, 0
        %233 = vmatprep.subr.bf16.mxu0 %v219
        %234 = vmatpush1.bf16.msra.mxu0 %v218
        %235 = vmatprep.subr.bf16.mxu0 %v221
        %236 = vmatpush1.bf16.msra.mxu0 %v220
        %237 = vmatprep.subr.bf16.mxu0 0
        %238 = vmatpush1.bf16.msra.mxu0 0
        %239 = vmatprep.subr.bf16.mxu0 0
        %240 = vmatpush1.bf16.msra.mxu0 0
        %241 = vmatprep.subr.bf16.mxu0 0
        %242 = vmatpush1.bf16.msra.mxu0 0
        %243 = vmatprep.subr.bf16.mxu0 0
        %244 = vmatpush1.bf16.msra.mxu0 0
        %245 = vmatprep.subr.bf16.mxu0 0
        %246 = vmatpush1.bf16.msra.mxu0 0
        %247 = vmatprep.subr.bf16.mxu0 0
        %248 = vmatpush1.bf16.msra.mxu0 0
        %249 = vmatprep.subr.bf16.mxu0 0
        %250 = vmatpush1.bf16.msra.mxu0 0
        %251 = vmatprep.subr.bf16.mxu0 0
        %252 = vmatpush1.bf16.msra.mxu0 0
        %253 = vmatprep.subr.bf16.mxu0 0
        %254 = vmatpush1.bf16.msra.mxu0 0
        %255 = vmatprep.subr.bf16.mxu0 0
        %256 = vmatpush1.bf16.msra.mxu0 0
        %257 = vmatprep.subr.bf16.mxu0 0
        %258 = vmatpush1.bf16.msra.mxu0 0
        %259 = vmatprep.subr.bf16.mxu0 0
        %260 = vmatpush1.bf16.msra.mxu0 0
        %261 = vmatprep.subr.bf16.mxu0 0
        %262 = vmatpush1.bf16.msra.mxu0 0
        %263 = vmatprep.subr.bf16.mxu0 0
        %264 = vmatpush1.bf16.msra.mxu0 0
        %265 = vmatprep.mubr.bf16.mxu0 0
        %266 = vmatmul.mubr.bf16.gmra.mrb[0].mxu0 %v228
        %v267 = vpop.f32.mrb[0].mxu0
        %v268 = vadd.f32 0.0, %v267
        %v269 = vpop.f32.mrb[0].mxu0
        %v270 = vadd.f32 0.0, %v269
        %v271 = vpop.f32.mrb[0].mxu0
        %v272 = vadd.f32 0.0, %v271
        %v273 = vpop.f32.mrb[0].mxu0
        %v274 = vadd.f32 0.0, %v273
        %275 = vmatprep.mubr.bf16.mxu0 0
        %276 = vmatmul.mubr.bf16.gmra.mrb[0].mxu0 %v231
        %v277 = vpop.f32.mrb[0].mxu0
        %v278 = vadd.f32 0.0, %v277
        %v279 = vpop.f32.mrb[0].mxu0
        %v280 = vadd.f32 0.0, %v279
        %v281 = vpop.f32.mrb[0].mxu0
        %v282 = vadd.f32 0.0, %v281
        %v283 = vpop.f32.mrb[0].mxu0
        %v284 = vadd.f32 0.0, %v283
        %285 = vdwg.mxu0
        %v286 = vmax.f32 %v268, 0.0
        %v287 = vmax.f32 %v272, 0.0
        %v288 = vmax.f32 %v278, 0.0
        %v289 = vmax.f32 %v282, 0.0
        %v290 = vmul.f32 %v286, 1.4142135
        %v291 = vmul.f32 %v287, 1.4142135
        %v292 = vmul.f32 %v288, 1.4142135
        %v293 = vmul.f32 %v289, 1.4142135
        %v294 = vpack.c.bf16 %v291, %v290
        %v295 = vpack.c.bf16 %v293, %v292
        %v296 = vld [vmem:[#allocation2] sm:$0xf]
        %v297 = vld [vmem:[#allocation2 + $0x4] sm:$0xf]
        %v298 = vld [vmem:[#allocation2 + $0x8] sm:$0xf]
        %v299 = vld [vmem:[#allocation2 + $0xc] sm:$0xf]
        %v300 = vld [vmem:[#allocation2 + $0x10] sm:$0xf]
        %v301 = vld [vmem:[#allocation2 + $0x14] sm:$0xf]
        %v302 = vld [vmem:[#allocation2 + $0x18] sm:$0xf]
        %v303 = vld [vmem:[#allocation2 + $0x1c] sm:$0xf]
        %v304 = vld [vmem:[#allocation2 + $0x20] sm:$0xf]
        %v305 = vld [vmem:[#allocation2 + $0x24] sm:$0xf]
        %v306 = vld [vmem:[#allocation2 + $0x28] sm:$0xf]
        %v307 = vld [vmem:[#allocation2 + $0x2c] sm:$0xf]
        %v308 = vld [vmem:[#allocation2 + $0x30] sm:$0xf]
        %v309 = vld [vmem:[#allocation2 + $0x34] sm:$0xf]
        %v310 = vld [vmem:[#allocation2 + $0x38] sm:$0xf]
        %v311 = vld [vmem:[#allocation2 + $0x3c] sm:$0xf]
        %v328 = vunpack.c.l.b16 %v296
        %v329 = vunpack.c.l.b16 %v297
        %v330 = vunpack.c.l.b16 %v298
        %v331 = vunpack.c.l.b16 %v299
        %v332 = vunpack.c.l.b16 %v300
        %v333 = vunpack.c.l.b16 %v301
        %v334 = vunpack.c.l.b16 %v302
        %v335 = vunpack.c.l.b16 %v303
        %v336 = vunpack.c.l.b16 %v304
        %v337 = vunpack.c.l.b16 %v305
        %v338 = vunpack.c.l.b16 %v306
        %v339 = vunpack.c.l.b16 %v307
        %v340 = vunpack.c.l.b16 %v308
        %v341 = vunpack.c.l.b16 %v309
        %v342 = vunpack.c.l.b16 %v310
        %v343 = vunpack.c.l.b16 %v311
        %v344 = vpack.c.b16 %v329, %v328
        %v345 = vpack.c.b16 %v331, %v330
        %v346 = vpack.c.b16 %v333, %v332
        %v347 = vpack.c.b16 %v335, %v334
        %v348 = vpack.c.b16 %v337, %v336
        %v349 = vpack.c.b16 %v339, %v338
        %v350 = vpack.c.b16 %v341, %v340
        %v351 = vpack.c.b16 %v343, %v342
        %360 = vmatprep.subr.bf16.mxu0 0
        %361 = vmatpush1.bf16.msra.mxu0 %v344
        %362 = vmatprep.subr.bf16.mxu0 0
        %363 = vmatpush1.bf16.msra.mxu0 %v345
        %364 = vmatprep.subr.bf16.mxu0 0
        %365 = vmatpush1.bf16.msra.mxu0 %v346
        %366 = vmatprep.subr.bf16.mxu0 0
        %367 = vmatpush1.bf16.msra.mxu0 %v347
        %368 = vmatprep.subr.bf16.mxu0 0
        %369 = vmatpush1.bf16.msra.mxu0 %v348
        %370 = vmatprep.subr.bf16.mxu0 0
        %371 = vmatpush1.bf16.msra.mxu0 %v349
        %372 = vmatprep.subr.bf16.mxu0 0
        %373 = vmatpush1.bf16.msra.mxu0 %v350
        %374 = vmatprep.subr.bf16.mxu0 0
        %375 = vmatpush1.bf16.msra.mxu0 %v351
        %376 = vmatprep.subr.bf16.mxu0 0
        %377 = vmatpush1.bf16.msra.mxu0 0
        %378 = vmatprep.subr.bf16.mxu0 0
        %379 = vmatpush1.bf16.msra.mxu0 0
        %380 = vmatprep.subr.bf16.mxu0 0
        %381 = vmatpush1.bf16.msra.mxu0 0
        %382 = vmatprep.subr.bf16.mxu0 0
        %383 = vmatpush1.bf16.msra.mxu0 0
        %384 = vmatprep.subr.bf16.mxu0 0
        %385 = vmatpush1.bf16.msra.mxu0 0
        %386 = vmatprep.subr.bf16.mxu0 0
        %387 = vmatpush1.bf16.msra.mxu0 0
        %388 = vmatprep.subr.bf16.mxu0 0
        %389 = vmatpush1.bf16.msra.mxu0 0
        %390 = vmatprep.subr.bf16.mxu0 0
        %391 = vmatpush1.bf16.msra.mxu0 0
        %392 = vmatprep.mubr.bf16.mxu0 0
        %393 = vmatmul.mubr.bf16.gmra.mrb[0].mxu0 %v294
        %v394 = vpop.f32.mrb[0].mxu0
        %v395 = vadd.f32 0.0, %v394
        %v396 = vpop.f32.mrb[0].mxu0
        %v397 = vpop.f32.mrb[0].mxu0
        %v398 = vadd.f32 0.0, %v397
        %v399 = vpop.f32.mrb[0].mxu0
        %400 = vmatprep.mubr.bf16.mxu0 0
        %401 = vmatmul.mubr.bf16.gmra.mrb[0].mxu0 %v295
        %v402 = vpop.f32.mrb[0].mxu0
        %v403 = vadd.f32 0.0, %v402
        %v404 = vpop.f32.mrb[0].mxu0
        %v405 = vpop.f32.mrb[0].mxu0
        %v406 = vadd.f32 0.0, %v405
        %v407 = vpop.f32.mrb[0].mxu0
        %408 = vdwg.mxu0
        %v409 = vmul.f32 %v270, %v395
        %v410 = vmul.f32 %v274, %v398
        %v411 = vmul.f32 %v280, %v403
        %v412 = vmul.f32 %v284, %v406
        %v413 = vlaneseq
        %v414 = vand.u32 %v413, 127
        %vm415 = vcmp.lt.s32.totalorder %v414, 4
        %v416 = vsel %vm415, %v290, %v409
        %v417 = vsel %vm415, %v291, %v410
        %v418 = vsel %vm415, %v292, %v411
        %v419 = vsel %vm415, %v293, %v412
        %420 = vst [vmem:[%s179] sm:$0xff] %v416
        %421 = vst [vmem:[%s179 + $0x8] sm:$0xff] %v417
        %422 = vst [vmem:[%s179 + $0x10] sm:$0xff] %v418
        %423 = vst [vmem:[%s179 + $0x18] sm:$0xff] %v419
        %s424 = sand.u32 %s94, 1
        %s425 = scalar_lea.sflag [#allocation4], %s424
        %s426 = sand.u32 %s94, 1
        %s427 = smul.addr %s426, 32
        %s428 = scalar_lea.vmem [#allocation5], %s427
        // Predicated region
        $region37: #{tpu_custom_call.1} parent=31 // pred_check
          %p429 = pneg %p104
        $region38: #{tpu_custom_call.1} parent=31 // pred_check_branch
          %431 = sbr.rel (%p429) target = $region40
        $region39: #{tpu_custom_call.1} parent=31 // pred_region
          %s432 = smul.u32 4, %s18
          %s434 = ssub.s32 512, 512
          %435 = vsyncadd %s425, %s434
          %s436 = smul.addr %s432, 128
          %s437 = scalar_lea.hbm %s3, %s436
          %s438 = sshll.u32 %s428, 4
          %s439 = int_to_ptr.vmem [resolvable:$true] %s438
          %444 = dma.vmem_to_hbm [thread:$0]  %s439, 512, %s437, %s425, 128, 128, 8
        $region40: #{tpu_custom_call.1} parent=31 // pred_fallthru
          _
      $region32: #{tpu_custom_call.1} parent=5 // pred_fallthru
        _
      %p445 = scmp.le.s32.totalorder 2, %s13
      // Predicated region
      $region41: #{tpu_custom_call.1} parent=5 // pred_check
        %p446 = pneg %p445
      $region42: #{tpu_custom_call.1} parent=5 // pred_check_branch
        %448 = sbr.rel (%p446) target = $region44
      $region43: #{tpu_custom_call.1} parent=5 // pred_region
        %s449 = ssub.s32 %s13, 2
        // Predicated region
        $region45: #{tpu_custom_call.1} parent=43 // pred_check
          %p450 = pneg %p110
        $region46: #{tpu_custom_call.1} parent=43 // pred_check_branch
          %452 = sbr.rel (%p450) target = $region48
        $region47: #{tpu_custom_call.1} parent=43 // pred_region
          %s453 = sand.u32 %s95, 1
          %s454 = scalar_lea.sflag [#allocation4], %s453
          %s455 = sand.u32 %s95, 1
          %s456 = smul.addr %s455, 32
          %s457 = scalar_lea.vmem [#allocation5], %s456
          %458 = dma.done %s454, 512
        $region48: #{tpu_custom_call.1} parent=43 // pred_fallthru
          _
      $region44: #{tpu_custom_call.1} parent=5 // pred_fallthru
        _
    $region6: #{tpu_custom_call.1} parent=1 // loop_footer
      %s17 = sadd.s32 1, %s13
    $region7: #{tpu_custom_call.1} parent=1 // loop_footer_branch
      %12 = sbr.rel target = $region3
    $region8: #{tpu_custom_call.1} parent=1 // loop_exit
      _
    %459 = vsyncpa [#allocation3], 1
    %s460 = scalar_lea.sflag [#allocation3], 1
    %461 = vsyncpa %s460, 1
    %462 = vsyncpa [#allocation4], 1
    %s463 = scalar_lea.sflag [#allocation4], 1
    %464 = vsyncpa %s463, 1

</llo_original>
